<compile_context>
chip_gen: v5e
topology: v5e:2x2
jax: 0.10.0
libtpu: 0.0.40
codegen_flags: <defaults>
</compile_context>

<pallas_src>
import jax
import jax.numpy as jnp
from jax.experimental import pallas as pl
from jax.experimental.pallas import tpu as pltpu

_NEG_BIG = -1e30        # finite stand-in for -inf on padded vocab columns
_LANES = 128


def _logits_lse_kernel(x_ref, w_ref, b_ref, out_ref, lse_ref, m_ref, l_ref):
    """One (N-tile, V-tile) step: stream raw logits, keep per-lane online LSE."""
    j = pl.program_id(1)

    @pl.when(j == 0)
    def _init():
        m_ref[...] = jnp.full_like(m_ref, -jnp.inf)
        l_ref[...] = jnp.zeros_like(l_ref)

    # Linear on the MXU in the input dtype (bf16), f32 accumulation; bias is a
    # lane-dense f32 (1, tv) tile broadcast-added on the VPU.
    logits = jnp.dot(x_ref[...], w_ref[...], preferred_element_type=jnp.float32)
    logits = logits + b_ref[...]
    out_ref[...] = logits                      # streamed (i, j) writeback

    # Per-lane online logsumexp: elementwise max/add/exp only (VPU + EUP); no
    # per-step cross-lane (XLU) reductions contending with MXU issue slots.
    tv = logits.shape[-1]
    ncol = tv // _LANES
    tile_m = logits[:, 0:_LANES]
    for c in range(1, ncol):
        tile_m = jnp.maximum(tile_m, logits[:, c * _LANES:(c + 1) * _LANES])
    m_new = jnp.maximum(m_ref[...], tile_m)
    l_new = l_ref[...] * jnp.exp(m_ref[...] - m_new)
    for c in range(ncol):
        l_new = l_new + jnp.exp(logits[:, c * _LANES:(c + 1) * _LANES] - m_new)
    m_ref[...] = m_new
    l_ref[...] = l_new

    @pl.when(j == pl.num_programs(1) - 1)
    def _finalize():
        # Single cross-lane combine per N tile.
        m_row = jnp.max(m_ref[...], axis=-1, keepdims=True)
        l_row = jnp.sum(l_ref[...] * jnp.exp(m_ref[...] - m_row),
                        axis=-1, keepdims=True)
        # The module applies LogSoftmax twice, but log_softmax is idempotent:
        # a single `logits - lse` is the exact forward result.
        lse_ref[...] = m_row + jnp.log(l_row)


def _normalize_kernel(logits_ref, lse_ref, out_ref):
    """Second (mem-bound) pass: out = logits - lse."""
    out_ref[...] = logits_ref[...] - lse_ref[...]


def _vmem_budget_bytes():
    """Chip-aware scoped-VMEM request: physical minus headroom, capped."""
    phys = 64 * 1024 * 1024
    try:
        phys = int(getattr(pltpu.get_tpu_info(), "vmem_capacity_bytes", phys))
    except Exception:
        pass
    # 128 MiB parts (v5e/v6e) -> ~100 MiB; 64 MiB parts (v7x) -> ~48 MiB.
    return max(32 * 1024 * 1024, min(phys - 16 * 1024 * 1024, 100 * 1024 * 1024))


def _pick_tile(n, cap, mult):
    """Largest divisor of n that is <= cap and a multiple of mult; else n."""
    cap = min(cap, n)
    t = cap - cap % mult
    while t >= mult:
        if n % t == 0:
            return t
        t -= mult
    return n                      # full-dim block (always layout-legal)


def multi_text_generator_forward(inputs, out_weight, out_bias, *,
                                 tn=None, tv=None,
                                 compute_dtype=jnp.bfloat16):
    """MultiTextGenerator forward (copy_attn=False, softmax, gen_type=0).

    inputs:     [N, H]  (N = tgt_len * batch, H = dec_rnn_size)
    out_weight: [V, H]  (torch nn.Linear layout)
    out_bias:   [V]
    returns:    [N, V] float32 log-probabilities
    """
    N, H = inputs.shape
    V, H2 = out_weight.shape
    assert H == H2 and out_bias.shape == (V,)

    # --- wrapper-side layout / dtype plumbing -------------------------------
    Np = -(-N // 8) * 8
    Vp = -(-V // _LANES) * _LANES

    x = inputs if compute_dtype is None else inputs.astype(compute_dtype)
    if Np != N:
        x = jnp.pad(x, ((0, Np - N), (0, 0)))

    w_t = jnp.transpose(out_weight)                         # [H, V], done once
    if compute_dtype is not None:
        w_t = w_t.astype(compute_dtype)
    b = out_bias.astype(jnp.float32)
    if Vp != V:
        w_t = jnp.pad(w_t, ((0, 0), (0, Vp - V)))
        b = jnp.pad(b, (0, Vp - V), constant_values=_NEG_BIG)
    b2d = b.reshape(1, Vp)

    x_bytes = x.dtype.itemsize
    w_bytes = w_t.dtype.itemsize

    # --- tile sizing under a chip-aware VMEM budget -------------------------
    vmem_limit = _vmem_budget_bytes()
    tile_budget = int(vmem_limit * 0.85)        # headroom for Mosaic internals

    if tn is None:
        tn = _pick_tile(Np, 512, 8)
    if tv is None:
        tv = _pick_tile(Vp, 1024, _LANES)
    assert Np % tn == 0 and Vp % tv == 0, (Np, tn, Vp, tv)
    assert tv % _LANES == 0, "tv must be a multiple of 128"

    def _footprint(tn_, tv_):
        return (2 * tn_ * H * x_bytes            # x tile (double-buffered on i)
                + 3 * H * tv_ * w_bytes          # weight stream (up to 3 buffers)
                + 2 * tv_ * 4                    # bias tile
                + 2 * tn_ * tv_ * 4              # streamed logits out tile
                + 2 * tn_ * 4                    # lse out
                + 2 * tn_ * _LANES * 4           # per-lane m / l scratch
                + 2 * tn_ * tv_ * 4)             # in-kernel f32 temporaries

    for _ in range(32):
        if _footprint(tn, tv) <= tile_budget:
            break
        w_part = 3 * H * tv * w_bytes
        if (w_part >= _footprint(tn, tv) - w_part
                and tv > _LANES and tv % (2 * _LANES) == 0):
            tv //= 2
        elif tn > 8 and tn % 16 == 0:
            tn //= 2
        elif tv > _LANES and tv % (2 * _LANES) == 0:
            tv //= 2
        else:
            break

    grid1 = (Np // tn, Vp // tv)

    cost1 = pl.CostEstimate(
        flops=2 * Np * Vp * H,
        transcendentals=Np * Vp,
        bytes_accessed=(x.size * x_bytes
                        + grid1[0] * w_t.size * w_bytes   # W re-streamed per N tile
                        + b2d.size * 4
                        + Np * Vp * 4 + Np * 4),
    )

    def _run_pass1(w_spec):
        return pl.pallas_call(
            _logits_lse_kernel,
            out_shape=(jax.ShapeDtypeStruct((Np, Vp), jnp.float32),
                       jax.ShapeDtypeStruct((Np, 1), jnp.float32)),
            grid_spec=pltpu.PrefetchScalarGridSpec(
                num_scalar_prefetch=0,
                grid=grid1,
                in_specs=[
                    pl.BlockSpec((tn, H), lambda i, j: (i, 0)),   # x: resident over V sweep
                    w_spec,                                       # W^T: streamed over V
                    pl.BlockSpec((1, tv), lambda i, j: (0, j)),   # bias tile
                ],
                out_specs=[
                    pl.BlockSpec((tn, tv), lambda i, j: (i, j)),  # raw logits, streamed
                    pl.BlockSpec((tn, 1), lambda i, j: (i, 0)),   # row LSE, written at last j
                ],
                scratch_shapes=[
                    pltpu.VMEM((tn, _LANES), jnp.float32),        # per-lane running max
                    pltpu.VMEM((tn, _LANES), jnp.float32),        # per-lane running sum-exp
                ],
            ),
            compiler_params=pltpu.CompilerParams(
                # N is sharded across TensorCores on megacore parts; each core
                # re-streams W, which bf16 weights + large tn keep cheap.
                dimension_semantics=("parallel", "arbitrary"),
                vmem_limit_bytes=vmem_limit,
            ),
            cost_estimate=cost1,
        )(x, w_t, b2d)

    w_idx = lambda i, j: (0, j)
    if grid1[1] >= 3:
        # 3-deep weight pipeline hides DMA jitter on the long V sweep; fall back
        # to the default double-buffered spec if this build rejects it.
        try:
            logits, lse = _run_pass1(
                pl.BlockSpec((H, tv), w_idx, pipeline_mode=pl.Buffered(3)))
        except Exception:
            logits, lse = _run_pass1(pl.BlockSpec((H, tv), w_idx))
    else:
        logits, lse = _run_pass1(pl.BlockSpec((H, tv), w_idx))

    # --- pass 2: lane-dense streamed normalization --------------------------
    tn2 = _pick_tile(Np, 512, 8)
    tv2 = _pick_tile(Vp, 2048, _LANES)
    while 16 * tn2 * tv2 > tile_budget and tv2 > _LANES and tv2 % (2 * _LANES) == 0:
        tv2 //= 2
    while 16 * tn2 * tv2 > tile_budget and tn2 > 8 and tn2 % 16 == 0:
        tn2 //= 2

    out_p = pl.pallas_call(
        _normalize_kernel,
        out_shape=jax.ShapeDtypeStruct((Np, Vp), jnp.float32),
        grid_spec=pltpu.PrefetchScalarGridSpec(
            num_scalar_prefetch=0,
            grid=(Np // tn2, Vp // tv2),
            in_specs=[
                pl.BlockSpec((tn2, tv2), lambda i, j: (i, j)),
                pl.BlockSpec((tn2, 1), lambda i, j: (i, 0)),
            ],
            out_specs=pl.BlockSpec((tn2, tv2), lambda i, j: (i, j)),
        ),
        compiler_params=pltpu.CompilerParams(
            dimension_semantics=("parallel", "parallel"),
            vmem_limit_bytes=vmem_limit,
        ),
    )(logits, lse)

    if Np != N or Vp != V:
        out_p = out_p[:N, :V]
    return out_p


def _reference(inputs, out_weight, out_bias, compute_dtype=jnp.bfloat16):
    """Literal op sequence of the module (Linear in compute dtype, Cast(f32),
    LogSoftmax, Cast(f32), LogSoftmax)."""
    x = inputs if compute_dtype is None else inputs.astype(compute_dtype)
    w = out_weight if compute_dtype is None else out_weight.astype(compute_dtype)
    logits = jnp.dot(x, w.T, preferred_element_type=jnp.float32)
    logits = logits + out_bias.astype(jnp.float32)
    lsm1 = jax.nn.log_softmax(logits, axis=-1)
    return jax.nn.log_softmax(lsm1, axis=-1)


if __name__ == "__main__":
    key = jax.random.PRNGKey(0)
    k_x, k_w, k_b = jax.random.split(key, 3)

    # Small shapes consistent with the module:
    #   dec_rnn_size H = 32, vocab len(field) V = 512, tgt_len * batch N = 64
    N, H, V = 64, 32, 512
    inputs = jax.random.normal(k_x, (N, H), dtype=jnp.float32)
    # self.out = nn.Linear(dec_rnn_size, len(field)) -> weight [V, H], bias [V]
    out_weight = jax.random.normal(k_w, (V, H), dtype=jnp.float32) * 0.1
    out_bias = jax.random.normal(k_b, (V,), dtype=jnp.float32) * 0.1

    # tn=32, tv=128 -> pass-1 grid (2, 4): exercises the parallel-N axis and the
    # multi-step per-lane online-LSE sweep at toy scale.
    out = multi_text_generator_forward(inputs, out_weight, out_bias, tn=32, tv=128)
    out = jax.block_until_ready(out)
    ref = _reference(inputs, out_weight, out_bias)
    assert out.shape == (N, V) and out.dtype == jnp.float32
    assert jnp.allclose(out, ref, atol=2e-3, rtol=2e-3), "mismatch (round shapes)"

    # Non-round shapes: exercises the wrapper padding path and auto tile picks
    # (no full-array VMEM fallback blocks).
    N2, V2 = 50, 300
    inputs2 = jax.random.normal(k_x, (N2, H), dtype=jnp.float32)
    out_weight2 = jax.random.normal(k_w, (V2, H), dtype=jnp.float32) * 0.1
    out_bias2 = jax.random.normal(k_b, (V2,), dtype=jnp.float32) * 0.1
    out2 = jax.block_until_ready(
        multi_text_generator_forward(inputs2, out_weight2, out_bias2))
    ref2 = _reference(inputs2, out_weight2, out_bias2)
    assert out2.shape == (N2, V2) and out2.dtype == jnp.float32
    assert jnp.allclose(out2, ref2, atol=2e-3, rtol=2e-3), "mismatch (padded shapes)"

    print("KERNEL_OK")
</pallas_src>

<mosaic_0001>
module attributes {stable_mosaic.version = 11 : i64} {
  func.func @_logits_lse_kernel(%arg0: i32, %arg1: i32, %arg2: memref<32x32xbf16, #tpu.memory_space<vmem>>, %arg3: memref<32x128xbf16, #tpu.memory_space<vmem>>, %arg4: memref<1x128xf32, #tpu.memory_space<vmem>>, %arg5: memref<32x128xf32, #tpu.memory_space<vmem>>, %arg6: memref<32x1xf32, #tpu.memory_space<vmem>>, %arg7: memref<32x128xf32, #tpu.memory_space<vmem>>, %arg8: memref<32x128xf32, #tpu.memory_space<vmem>>) attributes {dimension_semantics = [#tpu.dimension_semantics<parallel>, #tpu.dimension_semantics<arbitrary>], iteration_bounds = array<i64: 2, 4>, scalar_prefetch = 0 : i64, scratch_operands = 2 : i64, tpu.core_type = #tpu.core_type<tc>, window_params = [{transform_indices = @transform_0, window_bounds = array<i64: 32, 32>}, {transform_indices = @transform_1, window_bounds = array<i64: 32, 128>}, {transform_indices = @transform_2, window_bounds = array<i64: 1, 128>}, {transform_indices = @transform_3, window_bounds = array<i64: 32, 128>}, {transform_indices = @transform_4, window_bounds = array<i64: 32, 1>}]} {
    %c0_i32 = arith.constant 0 : i32
    %0 = arith.cmpi eq, %arg1, %c0_i32 : i32
    %1 = arith.extui %0 : i1 to i32
    %c0_i32_0 = arith.constant 0 : i32
    %2 = arith.cmpi ne, %1, %c0_i32_0 : i32
    scf.if %2 {
      %cst_19 = arith.constant 0xFF800000 : f32
      %25 = vector.broadcast %cst_19 : f32 to vector<32x128xf32>
      %c0_20 = arith.constant 0 : index
      %c0_21 = arith.constant 0 : index
      %26 = vector.load %arg7[%c0_20, %c0_21] : memref<32x128xf32, #tpu.memory_space<vmem>>, vector<32x128xf32>
      tpu.vector_store %arg7[%c0_20, %c0_21], %25 {strides = array<i32>} : memref<32x128xf32, #tpu.memory_space<vmem>>, vector<32x128xf32>,
      %cst_22 = arith.constant 0.000000e+00 : f32
      %27 = vector.broadcast %cst_22 : f32 to vector<32x128xf32>
      %c0_23 = arith.constant 0 : index
      %c0_24 = arith.constant 0 : index
      %28 = vector.load %arg8[%c0_23, %c0_24] : memref<32x128xf32, #tpu.memory_space<vmem>>, vector<32x128xf32>
      tpu.vector_store %arg8[%c0_23, %c0_24], %27 {strides = array<i32>} : memref<32x128xf32, #tpu.memory_space<vmem>>, vector<32x128xf32>,
    } else {
    }
    %c0 = arith.constant 0 : index
    %c0_1 = arith.constant 0 : index
    %3 = vector.load %arg2[%c0, %c0_1] : memref<32x32xbf16, #tpu.memory_space<vmem>>, vector<32x32xbf16>
    %c0_2 = arith.constant 0 : index
    %c0_3 = arith.constant 0 : index
    %4 = vector.load %arg3[%c0_2, %c0_3] : memref<32x128xbf16, #tpu.memory_space<vmem>>, vector<32x128xbf16>
    %cst = arith.constant dense<0.000000e+00> : vector<32x128xf32>
    %5 = tpu.matmul %3, %4, %cst {dimension_numbers = #tpu.dot_dimension_numbers<[1], [0], [0], [1], [0, 0, 1, 1], [], []>} : vector<32x32xbf16>, vector<32x128xbf16>, vector<32x128xf32> -> vector<32x128xf32>
    %c0_4 = arith.constant 0 : index
    %c0_5 = arith.constant 0 : index
    %6 = vector.load %arg4[%c0_4, %c0_5] : memref<1x128xf32, #tpu.memory_space<vmem>>, vector<1x128xf32>
    %7 = vector.broadcast %6 : vector<1x128xf32> to vector<32x128xf32>
    %8 = arith.addf %5, %7 : vector<32x128xf32>
    %c0_6 = arith.constant 0 : index
    %c0_7 = arith.constant 0 : index
    %9 = vector.load %arg5[%c0_6, %c0_7] : memref<32x128xf32, #tpu.memory_space<vmem>>, vector<32x128xf32>
    tpu.vector_store %arg5[%c0_6, %c0_7], %8 {strides = array<i32>} : memref<32x128xf32, #tpu.memory_space<vmem>>, vector<32x128xf32>,
    %c0_8 = arith.constant 0 : index
    %c0_9 = arith.constant 0 : index
    %10 = vector.load %arg7[%c0_8, %c0_9] : memref<32x128xf32, #tpu.memory_space<vmem>>, vector<32x128xf32>
    %11 = arith.maximumf %10, %8 : vector<32x128xf32>
    %c0_10 = arith.constant 0 : index
    %c0_11 = arith.constant 0 : index
    %12 = vector.load %arg8[%c0_10, %c0_11] : memref<32x128xf32, #tpu.memory_space<vmem>>, vector<32x128xf32>
    %c0_12 = arith.constant 0 : index
    %c0_13 = arith.constant 0 : index
    %13 = vector.load %arg7[%c0_12, %c0_13] : memref<32x128xf32, #tpu.memory_space<vmem>>, vector<32x128xf32>
    %14 = arith.subf %13, %11 : vector<32x128xf32>
    %15 = math.exp %14 : vector<32x128xf32>
    %16 = arith.mulf %12, %15 : vector<32x128xf32>
    %17 = arith.subf %8, %11 : vector<32x128xf32>
    %18 = math.exp %17 : vector<32x128xf32>
    %19 = arith.addf %16, %18 : vector<32x128xf32>
    %c0_14 = arith.constant 0 : index
    %c0_15 = arith.constant 0 : index
    %20 = vector.load %arg7[%c0_14, %c0_15] : memref<32x128xf32, #tpu.memory_space<vmem>>, vector<32x128xf32>
    tpu.vector_store %arg7[%c0_14, %c0_15], %11 {strides = array<i32>} : memref<32x128xf32, #tpu.memory_space<vmem>>, vector<32x128xf32>,
    %c0_16 = arith.constant 0 : index
    %c0_17 = arith.constant 0 : index
    %21 = vector.load %arg8[%c0_16, %c0_17] : memref<32x128xf32, #tpu.memory_space<vmem>>, vector<32x128xf32>
    tpu.vector_store %arg8[%c0_16, %c0_17], %19 {strides = array<i32>} : memref<32x128xf32, #tpu.memory_space<vmem>>, vector<32x128xf32>,
    %c3_i32 = arith.constant 3 : i32
    %22 = arith.cmpi eq, %arg1, %c3_i32 : i32
    %23 = arith.extui %22 : i1 to i32
    %c0_i32_18 = arith.constant 0 : i32
    %24 = arith.cmpi ne, %23, %c0_i32_18 : i32
    scf.if %24 {
      %c0_19 = arith.constant 0 : index
      %c0_20 = arith.constant 0 : index
      %25 = vector.load %arg7[%c0_19, %c0_20] : memref<32x128xf32, #tpu.memory_space<vmem>>, vector<32x128xf32>
      %cst_21 = arith.constant dense<0xFF800000> : vector<32xf32>
      %26 = vector.multi_reduction <maximumf>, %25, %cst_21 [1] : vector<32x128xf32> to vector<32xf32>
      %27 = vector.shape_cast %26 : vector<32xf32> to vector<32x1xf32>
      %c0_22 = arith.constant 0 : index
      %c0_23 = arith.constant 0 : index
      %28 = vector.load %arg8[%c0_22, %c0_23] : memref<32x128xf32, #tpu.memory_space<vmem>>, vector<32x128xf32>
      %c0_24 = arith.constant 0 : index
      %c0_25 = arith.constant 0 : index
      %29 = vector.load %arg7[%c0_24, %c0_25] : memref<32x128xf32, #tpu.memory_space<vmem>>, vector<32x128xf32>
      %30 = vector.broadcast %27 : vector<32x1xf32> to vector<32x128xf32>
      %31 = arith.subf %29, %30 : vector<32x128xf32>
      %32 = math.exp %31 : vector<32x128xf32>
      %33 = arith.mulf %28, %32 : vector<32x128xf32>
      %cst_26 = arith.constant dense<0.000000e+00> : vector<32xf32>
      %34 = vector.multi_reduction <add>, %33, %cst_26 [1] : vector<32x128xf32> to vector<32xf32>
      %35 = vector.shape_cast %34 : vector<32xf32> to vector<32x1xf32>
      %36 = math.log %35 : vector<32x1xf32>
      %37 = arith.addf %27, %36 : vector<32x1xf32>
      %c0_27 = arith.constant 0 : index
      %c0_28 = arith.constant 0 : index
      %38 = vector.load %arg6[%c0_27, %c0_28] : memref<32x1xf32, #tpu.memory_space<vmem>>, vector<32x1xf32>
      tpu.vector_store %arg6[%c0_27, %c0_28], %37 {strides = array<i32>} : memref<32x1xf32, #tpu.memory_space<vmem>>, vector<32x1xf32>,
    } else {
    }
    return
  }
  func.func @transform_0(%arg0: i32, %arg1: i32) -> (i32, i32) {
    %c0_i32 = arith.constant 0 : i32
    %c0_i32_0 = arith.constant 0 : i32
    return %arg0, %c0_i32 : i32, i32
  }
  func.func @transform_1(%arg0: i32, %arg1: i32) -> (i32, i32) {
    %c0_i32 = arith.constant 0 : i32
    %c0_i32_0 = arith.constant 0 : i32
    return %c0_i32, %arg1 : i32, i32
  }
  func.func @transform_2(%arg0: i32, %arg1: i32) -> (i32, i32) {
    %c0_i32 = arith.constant 0 : i32
    %c0_i32_0 = arith.constant 0 : i32
    return %c0_i32, %arg1 : i32, i32
  }
  func.func @transform_3(%arg0: i32, %arg1: i32) -> (i32, i32) {
    %c0_i32 = arith.constant 0 : i32
    return %arg0, %arg1 : i32, i32
  }
  func.func @transform_4(%arg0: i32, %arg1: i32) -> (i32, i32) {
    %c0_i32 = arith.constant 0 : i32
    %c0_i32_0 = arith.constant 0 : i32
    return %arg0, %c0_i32 : i32, i32
  }
}

</mosaic_0001>

<llo_original>
// kernel: tpu_custom_call.1
$region0: #{tpu_custom_call.1}
  #allocation0 [shape = 'u32[]', space=smem, size = 0x4, offset = 0x4, fixed_abs, tag = 'smem constant byte address 0x4 - core index']
  #allocation1 [shape = 'u32[72,128]{1,0:T(1,128)}', space=vmem, size = 0x9000, scoped, tag = 'internal scratch']
  #allocation2 [shape = 'f32[32,128]{1,0:T(8,128)}', space=vmem, size = 0x4000, scoped, tag = 'scratch operand']
  #allocation3 [shape = 'f32[32,128]{1,0:T(8,128)}', space=vmem, size = 0x4000, scoped, tag = 'scratch operand']
  %s0 = inlined_call_operand.vmem [shape: bf16[64,32], index: 0, kind: input, shape index: {}]
  %s1 = inlined_call_operand.hbm [shape: bf16[32,512], index: 1, kind: input, shape index: {}]
  %s2 = inlined_call_operand.vmem [shape: f32[1,512], index: 2, kind: input, shape index: {}]
  %s3 = inlined_call_operand.hbm [shape: f32[64,512], index: 3, kind: output, shape index: {0}]
  %s4 = inlined_call_operand.vmem [shape: f32[64,1], index: 4, kind: output, shape index: {1}]
  %5 = xla_tuple %s3, %s4
  %s6 = sld [smem:[#allocation0]]
  $region65: #{tpu_custom_call.1} parent=0
    _
  %s8 = ssub.s32 1, %s6
  %s9 = scalar_select 0, %s8, %s6
  $region1: #{tpu_custom_call.1} parent=0
    #allocation4 [shape = 'u8[16384]{0}', space=vmem, size = 0x4000, scoped, tag = 'input window, operand 1']
    #allocation5 [shape = 's32[2]{0}', space=sflag, size = 0x8, scoped, tag = 'scoped memory for tpu_custom_call.1']
    #allocation6 [shape = 's32[2]{0}', space=sflag, size = 0x8, scoped, tag = 'scoped memory for tpu_custom_call.1']
    #allocation7 [shape = 'u8[32768]{0}', space=vmem, size = 0x8000, scoped, tag = 'output window, operand 0']
    %10 = vsyncpa [#allocation5], 0
    %s11 = scalar_lea.sflag [#allocation5], 1
    %12 = vsyncpa %s11, 0
    %13 = vsyncpa [#allocation6], 0
    %s14 = scalar_lea.sflag [#allocation6], 1
    %15 = vsyncpa %s14, 0
    loop: start=0, step=1, limit=10
    $region2: #{tpu_custom_call.1} parent=1 // loop_pre_header
      _
    $region3: #{tpu_custom_call.1} parent=1 // loop_header
      %s17 = sphi 0, %s21
      %p18 = scmp.ge.s32.totalorder %s17, 10
      %s24 = sphi 0, %s36
      %s25 = sphi 0, %s32
      %s26 = sphi 0, %s24
      %s27 = sphi 0, %s25
      %s28 = sphi 0, %s26
      %s29 = sphi 0, %s27
      %s39 = sphi 0, %s41
      %s42 = sphi 0, %s39
      %s43 = sphi 0, %s42
      %s59 = sphi 0, %s43
      %s65 = sphi 0, %s67
      %s68 = sphi 0, %s65
      %s69 = sphi 0, %s68
      %s85 = sphi 0, %s69
      %s91 = sphi 0, %s93
      %s94 = sphi 0, %s91
      %s95 = sphi 0, %s94
      %s111 = sphi 0, %s95
      %s119 = sphi 0, %s121
      %s122 = sphi 0, %s119
      %s123 = sphi 0, %s122
      %s139 = sphi 0, %s123
      %s145 = sphi 0, %s147
      %s148 = sphi 0, %s145
      %s149 = sphi 0, %s148
      %s165 = sphi 0, %s149
    $region4: #{tpu_custom_call.1} parent=1 // loop_header_branch
      %20 = sbr.rel (%p18) target = $region8
    $region5: #{tpu_custom_call.1} parent=1 // loop_body
      %s22 = ssub.s32 %s17, 1
      %s23 = ssub.s32 %s17, 2
      %s30 = sadd.s32 1, %s25
      %p31 = scmp.ge.s32.totalorder %s30, 4
      %s32 = scalar_select %p31, 0, %s30
      %s33 = sadd.s32 1, %s24
      %s34 = scalar_select %p31, %s33, %s24
      %p35 = scmp.ge.s32.totalorder %s34, 2
      %s36 = scalar_select %p35, 0, %s34
      %s37 = ssub.s32 %s24, %s36
      %p38 = scmp.eq.s32.totalorder %s37, 0
      %s40 = sadd.s32 %s39, 1
      %s41 = scalar_select %p38, %s39, %s40
      %p44 = pneg %p38
      %p45 = scmp.eq.s32.totalorder %s17, 7
      %p46 = por %p44, %p45
      %p47 = scmp.ne.s32.totalorder %s39, %s42
      %p48 = scmp.eq.s32.totalorder %s17, 0
      %p49 = por %p47, %p48
      %p50 = scmp.ne.s32.totalorder %s39, %s42
      %p51 = scmp.eq.s32.totalorder %s22, 7
      %p52 = por %p50, %p51
      %p53 = scmp.ne.s32.totalorder %s42, %s43
      %p54 = scmp.eq.s32.totalorder %s22, 0
      %p55 = por %p53, %p54
      %p56 = scmp.ne.s32.totalorder %s42, %s43
      %p57 = scmp.eq.s32.totalorder %s23, 7
      %p58 = por %p56, %p57
      %p60 = scmp.ne.s32.totalorder %s43, %s59
      %p61 = scmp.eq.s32.totalorder %s23, 0
      %p62 = por %p60, %p61
      %s63 = ssub.s32 %s25, %s32
      %p64 = scmp.eq.s32.totalorder %s63, 0
      %s66 = sadd.s32 %s65, 1
      %s67 = scalar_select %p64, %s65, %s66
      %p70 = pneg %p64
      %p71 = scmp.eq.s32.totalorder %s17, 7
      %p72 = por %p70, %p71
      %p73 = scmp.ne.s32.totalorder %s65, %s68
      %p74 = scmp.eq.s32.totalorder %s17, 0
      %p75 = por %p73, %p74
      %p76 = scmp.ne.s32.totalorder %s65, %s68
      %p77 = scmp.eq.s32.totalorder %s22, 7
      %p78 = por %p76, %p77
      %p79 = scmp.ne.s32.totalorder %s68, %s69
      %p80 = scmp.eq.s32.totalorder %s22, 0
      %p81 = por %p79, %p80
      %p82 = scmp.ne.s32.totalorder %s68, %s69
      %p83 = scmp.eq.s32.totalorder %s23, 7
      %p84 = por %p82, %p83
      %p86 = scmp.ne.s32.totalorder %s69, %s85
      %p87 = scmp.eq.s32.totalorder %s23, 0
      %p88 = por %p86, %p87
      %s89 = ssub.s32 %s25, %s32
      %p90 = scmp.eq.s32.totalorder %s89, 0
      %s92 = sadd.s32 %s91, 1
      %s93 = scalar_select %p90, %s91, %s92
      %p96 = pneg %p90
      %p97 = scmp.eq.s32.totalorder %s17, 7
      %p98 = por %p96, %p97
      %p99 = scmp.ne.s32.totalorder %s91, %s94
      %p100 = scmp.eq.s32.totalorder %s17, 0
      %p101 = por %p99, %p100
      %p102 = scmp.ne.s32.totalorder %s91, %s94
      %p103 = scmp.eq.s32.totalorder %s22, 7
      %p104 = por %p102, %p103
      %p105 = scmp.ne.s32.totalorder %s94, %s95
      %p106 = scmp.eq.s32.totalorder %s22, 0
      %p107 = por %p105, %p106
      %p108 = scmp.ne.s32.totalorder %s94, %s95
      %p109 = scmp.eq.s32.totalorder %s23, 7
      %p110 = por %p108, %p109
      %p112 = scmp.ne.s32.totalorder %s95, %s111
      %p113 = scmp.eq.s32.totalorder %s23, 0
      %p114 = por %p112, %p113
      %s115 = ssub.s32 %s24, %s36
      %s116 = ssub.s32 %s25, %s32
      %s117 = sor.u32 %s115, %s116
      %p118 = scmp.eq.s32.totalorder %s117, 0
      %s120 = sadd.s32 %s119, 1
      %s121 = scalar_select %p118, %s119, %s120
      %p124 = pneg %p118
      %p125 = scmp.eq.s32.totalorder %s17, 7
      %p126 = por %p124, %p125
      %p127 = scmp.ne.s32.totalorder %s119, %s122
      %p128 = scmp.eq.s32.totalorder %s17, 0
      %p129 = por %p127, %p128
      %p130 = scmp.ne.s32.totalorder %s119, %s122
      %p131 = scmp.eq.s32.totalorder %s22, 7
      %p132 = por %p130, %p131
      %p133 = scmp.ne.s32.totalorder %s122, %s123
      %p134 = scmp.eq.s32.totalorder %s22, 0
      %p135 = por %p133, %p134
      %p136 = scmp.ne.s32.totalorder %s122, %s123
      %p137 = scmp.eq.s32.totalorder %s23, 7
      %p138 = por %p136, %p137
      %p140 = scmp.ne.s32.totalorder %s123, %s139
      %p141 = scmp.eq.s32.totalorder %s23, 0
      %p142 = por %p140, %p141
      %s143 = ssub.s32 %s24, %s36
      %p144 = scmp.eq.s32.totalorder %s143, 0
      %s146 = sadd.s32 %s145, 1
      %s147 = scalar_select %p144, %s145, %s146
      %p150 = pneg %p144
      %p151 = scmp.eq.s32.totalorder %s17, 7
      %p152 = por %p150, %p151
      %p153 = scmp.ne.s32.totalorder %s145, %s148
      %p154 = scmp.eq.s32.totalorder %s17, 0
      %p155 = por %p153, %p154
      %p156 = scmp.ne.s32.totalorder %s145, %s148
      %p157 = scmp.eq.s32.totalorder %s22, 7
      %p158 = por %p156, %p157
      %p159 = scmp.ne.s32.totalorder %s148, %s149
      %p160 = scmp.eq.s32.totalorder %s22, 0
      %p161 = por %p159, %p160
      %p162 = scmp.ne.s32.totalorder %s148, %s149
      %p163 = scmp.eq.s32.totalorder %s23, 7
      %p164 = por %p162, %p163
      %p166 = scmp.ne.s32.totalorder %s149, %s165
      %p167 = scmp.eq.s32.totalorder %s23, 0
      %p168 = por %p166, %p167
      %p169 = scmp.le.s32.totalorder 1, %s17
      %p170 = scmp.lt.s32.totalorder %s17, 9
      %p171 = pnand %p169, %p170
      %p172 = pneg %p171
      // Predicated region
      $region9: #{tpu_custom_call.1} parent=5 // pred_check
        _
      $region10: #{tpu_custom_call.1} parent=5 // pred_check_branch
        %174 = sbr.rel (%p171) target = $region12
      $region11: #{tpu_custom_call.1} parent=5 // pred_region
        %s175 = ssub.s32 %s17, 1
      $region12: #{tpu_custom_call.1} parent=5 // pred_fallthru
        _
      %p176 = scmp.lt.s32.totalorder %s17, 8
      // Predicated region
      $region13: #{tpu_custom_call.1} parent=5 // pred_check
        %p177 = pneg %p176
      $region14: #{tpu_custom_call.1} parent=5 // pred_check_branch
        %179 = sbr.rel (%p177) target = $region16
      $region15: #{tpu_custom_call.1} parent=5 // pred_region
        // Predicated region
        $region17: #{tpu_custom_call.1} parent=15 // pred_check
          %p180 = pneg %p49
        $region18: #{tpu_custom_call.1} parent=15 // pred_check_branch
          %182 = sbr.rel (%p180) target = $region20
        $region19: #{tpu_custom_call.1} parent=15 // pred_region
          %s183 = smul.u32 4, %s24
          %p184 = scmp.lt.s32.totalorder %s183, 7
          %s185 = scalar_select %p184, %s183, 7
          %s186 = smul.addr %s185, 4
          %s187 = scalar_lea.vmem %s0, %s186
          %s188 = smul.u32 4, %s24
        $region20: #{tpu_custom_call.1} parent=15 // pred_fallthru
          _
        // Predicated region
        $region21: #{tpu_custom_call.1} parent=15 // pred_check
          %p189 = pneg %p75
        $region22: #{tpu_custom_call.1} parent=15 // pred_check_branch
          %191 = sbr.rel (%p189) target = $region24
        $region23: #{tpu_custom_call.1} parent=15 // pred_region
          %s192 = sand.u32 %s65, 1
          %s193 = scalar_lea.sflag [#allocation5], %s192
          %s194 = sand.u32 %s65, 1
          %s195 = smul.addr %s194, 16
          %s196 = scalar_lea.vmem [#allocation4], %s195
          %198 = vsyncadd %s193, 0
          %s199 = smul.addr %s25, 4
          %s200 = scalar_lea.hbm %s1, %s199
          %s201 = sshll.u32 %s200, 4
          %s202 = int_to_ptr.hbm [resolvable:$true] %s201
          %s203 = sshll.u32 %s196, 4
          %s204 = int_to_ptr.vmem [resolvable:$true] %s203
          %209 = dma.hbm_to_vmem [thread:$0]  %s202, 256, %s204, %s193, 256, 64, 4
        $region24: #{tpu_custom_call.1} parent=15 // pred_fallthru
          _
        // Predicated region
        $region25: #{tpu_custom_call.1} parent=15 // pred_check
          %p210 = pneg %p101
        $region26: #{tpu_custom_call.1} parent=15 // pred_check_branch
          %212 = sbr.rel (%p210) target = $region28
        $region27: #{tpu_custom_call.1} parent=15 // pred_region
          %p213 = scmp.lt.s32.totalorder %s25, 3
          %s214 = scalar_select %p213, %s25, 3
          %s215 = scalar_lea.vmem %s2, %s214
        $region28: #{tpu_custom_call.1} parent=15 // pred_fallthru
          _
      $region16: #{tpu_custom_call.1} parent=5 // pred_fallthru
        _
      %p216 = scmp.le.s32.totalorder 1, %s17
      %p217 = scmp.lt.s32.totalorder %s17, 9
      %p218 = pnand %p216, %p217
      %p219 = pneg %p218
      // Predicated region
      $region29: #{tpu_custom_call.1} parent=5 // pred_check
        _
      $region30: #{tpu_custom_call.1} parent=5 // pred_check_branch
        %221 = sbr.rel (%p218) target = $region32
      $region31: #{tpu_custom_call.1} parent=5 // pred_region
        %s222 = ssub.s32 %s17, 1
        %s223 = sand.u32 %s68, 1
        %s224 = scalar_lea.sflag [#allocation5], %s223
        %s225 = sand.u32 %s68, 1
        %s226 = smul.addr %s225, 16
        %s227 = scalar_lea.vmem [#allocation4], %s226
        // Predicated region
        $region33: #{tpu_custom_call.1} parent=31 // pred_check
          %p228 = pneg %p81
        $region34: #{tpu_custom_call.1} parent=31 // pred_check_branch
          %230 = sbr.rel (%p228) target = $region36
        $region35: #{tpu_custom_call.1} parent=31 // pred_region
          %232 = dma.done %s224, 256
        $region36: #{tpu_custom_call.1} parent=31 // pred_fallthru
          _
        %s233 = smul.u32 4, %s26
        %p234 = scmp.lt.s32.totalorder %s233, 7
        %s235 = scalar_select %p234, %s233, 7
        %s236 = smul.addr %s235, 4
        %s237 = scalar_lea.vmem %s0, %s236
        %p238 = pneg %p55
        %p239 = pneg %p52
        %s240 = sand.u32 %s68, 1
        %s241 = scalar_lea.sflag [#allocation5], %s240
        %s242 = sand.u32 %s68, 1
        %s243 = smul.addr %s242, 16
        %s244 = scalar_lea.vmem [#allocation4], %s243
        %p245 = pneg %p81
        %p246 = pneg %p78
        %p247 = scmp.lt.s32.totalorder %s27, 3
        %s248 = scalar_select %p247, %s27, 3
        %s249 = scalar_lea.vmem %s2, %s248
        %p250 = pneg %p107
        %p251 = pneg %p104
        %p252 = pneg %p135
        %p253 = pneg %p132
        %s254 = sand.u32 %s122, 1
        %s255 = scalar_lea.sflag [#allocation6], %s254
        %s256 = sand.u32 %s122, 1
        %s257 = smul.addr %s256, 32
        %s258 = scalar_lea.vmem [#allocation7], %s257
        %p259 = pneg %p161
        %p260 = pneg %p158
        %s261 = smul.u32 4, %s26
        %p262 = scmp.lt.s32.totalorder %s261, 7
        %s263 = scalar_select %p262, %s261, 7
        %s264 = smul.addr %s263, 8
        %s265 = scalar_lea.vmem %s4, %s264
        %s266 = smul.u32 4, %s26
        %p267 = scmp.lt.s32.totalorder %s266, 7
        %s268 = scalar_select %p267, %s266, 7
        %s269 = smul.addr %s268, 4
        %s270 = scalar_lea.vmem %s0, %s269
        %s271 = smul.u32 4, %s26
        %p272 = scmp.lt.s32.totalorder %s27, 3
        %s273 = scalar_select %p272, %s27, 3
        %s274 = scalar_lea.vmem %s2, %s273
        %s275 = smul.u32 4, %s26
        %s276 = smul.u32 4, %s26
        %p277 = scmp.lt.s32.totalorder %s276, 7
        %s278 = scalar_select %p277, %s276, 7
        %s279 = smul.addr %s278, 8
        %s280 = scalar_lea.vmem %s4, %s279
        %s281 = smul.u32 4, %s26
        %p283 = scmp.eq.s32.totalorder %s27, 0
        // Predicated region
        $region37: #{tpu_custom_call.1} parent=31 // pred_check
          %p284 = pneg %p283
        $region38: #{tpu_custom_call.1} parent=31 // pred_check_branch
          %286 = sbr.rel (%p284) target = $region40
        $region39: #{tpu_custom_call.1} parent=31 // pred_region
          %287 = vst [vmem:[#allocation2] sm:$0xff] -inf
          %288 = vst [vmem:[#allocation2 + $0x8] sm:$0xff] -inf
          %289 = vst [vmem:[#allocation2 + $0x10] sm:$0xff] -inf
          %290 = vst [vmem:[#allocation2 + $0x18] sm:$0xff] -inf
          %291 = vst [vmem:[#allocation3] sm:$0xff] 0.0
          %292 = vst [vmem:[#allocation3 + $0x8] sm:$0xff] 0.0
          %293 = vst [vmem:[#allocation3 + $0x10] sm:$0xff] 0.0
          %294 = vst [vmem:[#allocation3 + $0x18] sm:$0xff] 0.0
        $region40: #{tpu_custom_call.1} parent=31 // pred_fallthru
          _
        %v295 = vld [vmem:[%s270] sm:$0xf]
        %v296 = vld [vmem:[%s270 + $0x4] sm:$0xf]
        %v297 = vld [vmem:[%s270 + $0x8] sm:$0xf]
        %v298 = vld [vmem:[%s270 + $0xc] sm:$0xf]
        %v299 = vld [vmem:[%s227] sm:$0xf]
        %v300 = vld [vmem:[%s227 + $0x4] sm:$0xf]
        %v301 = vld [vmem:[%s227 + $0x8] sm:$0xf]
        %v302 = vld [vmem:[%s227 + $0xc] sm:$0xf]
        %v303 = vld [vmem:[%s274] sm:$0x1]
        %v305 = vperm.slane %v303, 0
        %v311 = vunpack.c.l.b16 %v295
        %v312 = vunpack.c.l.b16 %v296
        %v313 = vunpack.c.l.b16 %v297
        %v314 = vunpack.c.l.b16 %v298
        %v315 = vpack.c.b16 %v312, %v311
        %v316 = vpack.c.b16 %v314, %v313
        %v321 = vunpack.c.l.b16 %v299
        %v322 = vunpack.c.l.b16 %v300
        %v323 = vunpack.c.l.b16 %v301
        %v324 = vunpack.c.l.b16 %v302
        %v325 = vpack.c.b16 %v322, %v321
        %v326 = vpack.c.b16 %v324, %v323
        %vm329 = vcmask 261120
        %v331 = vsel %vm329, %v315, 0
        %v334 = vsel %vm329, %v316, 0
        %336 = vmatpush.bf16.msra.mxu0 0
        %337 = vmatpush.bf16.msra.mxu0 0
        %338 = vmatpush.bf16.msra.mxu0 0
        %339 = vmatpush.bf16.msra.mxu0 0
        %340 = vmatpush.bf16.msra.mxu0 0
        %341 = vmatpush.bf16.msra.mxu0 0
        %342 = vmatpush.bf16.msra.mxu0 %v326
        %343 = vmatpush.bf16.msra.mxu0 %v325
        %344 = vmatmul.bf16.gmra.mxu0 %v331
        %v345 = vpop.f32.mrf.mxu0
        %v346 = vadd.f32 %v305, %v345
        %v347 = vpop.f32.mrf.mxu0
        %v348 = vadd.f32 %v305, %v347
        %349 = vmatmul.bf16.gmra.mxu0 %v334
        %v350 = vpop.f32.mrf.mxu0
        %v351 = vadd.f32 %v305, %v350
        %v352 = vpop.f32.mrf.mxu0
        %v353 = vadd.f32 %v305, %v352
        %354 = vdwg.mxu0
        %355 = vst [vmem:[%s258] sm:$0xff] %v346
        %356 = vst [vmem:[%s258 + $0x8] sm:$0xff] %v348
        %357 = vst [vmem:[%s258 + $0x10] sm:$0xff] %v351
        %358 = vst [vmem:[%s258 + $0x18] sm:$0xff] %v353
        %v359 = vld [vmem:[#allocation2] sm:$0xff]
        %v360 = vld [vmem:[#allocation2 + $0x8] sm:$0xff]
        %v361 = vld [vmem:[#allocation2 + $0x10] sm:$0xff]
        %v362 = vld [vmem:[#allocation2 + $0x18] sm:$0xff]
        %v363 = vmax.f32 %v359, %v346
        %v364 = vmax.f32 %v360, %v348
        %v365 = vmax.f32 %v361, %v351
        %v366 = vmax.f32 %v362, %v353
        %v367 = vld [vmem:[#allocation3] sm:$0xff]
        %v368 = vld [vmem:[#allocation3 + $0x8] sm:$0xff]
        %v369 = vld [vmem:[#allocation3 + $0x10] sm:$0xff]
        %v370 = vld [vmem:[#allocation3 + $0x18] sm:$0xff]
        %v371 = vsub.f32 %v359, %v363
        %v372 = vsub.f32 %v360, %v364
        %v373 = vsub.f32 %v361, %v365
        %v374 = vsub.f32 %v362, %v366
        %v375 = vmul.f32 %v371, 1.442695
        %v376 = vpow.pop %v375
        %v377 = vmul.f32 %v372, 1.442695
        %v378 = vpow.pop %v377
        %v379 = vmul.f32 %v373, 1.442695
        %v380 = vpow.pop %v379
        %v381 = vmul.f32 %v374, 1.442695
        %v382 = vpow.pop %v381
        %v383 = vmul.f32 %v367, %v376
        %v384 = vmul.f32 %v368, %v378
        %v385 = vmul.f32 %v369, %v380
        %v386 = vmul.f32 %v370, %v382
        %v387 = vsub.f32 %v346, %v363
        %v388 = vsub.f32 %v348, %v364
        %v389 = vsub.f32 %v351, %v365
        %v390 = vsub.f32 %v353, %v366
        %v391 = vmul.f32 %v387, 1.442695
        %v392 = vpow.pop %v391
        %v393 = vmul.f32 %v388, 1.442695
        %v394 = vpow.pop %v393
        %v395 = vmul.f32 %v389, 1.442695
        %v396 = vpow.pop %v395
        %v397 = vmul.f32 %v390, 1.442695
        %v398 = vpow.pop %v397
        %v399 = vadd.f32 %v383, %v392
        %v400 = vadd.f32 %v384, %v394
        %v401 = vadd.f32 %v385, %v396
        %v402 = vadd.f32 %v386, %v398
        %403 = vst [vmem:[#allocation2] sm:$0xff] %v363
        %404 = vst [vmem:[#allocation2 + $0x8] sm:$0xff] %v364
        %405 = vst [vmem:[#allocation2 + $0x10] sm:$0xff] %v365
        %406 = vst [vmem:[#allocation2 + $0x18] sm:$0xff] %v366
        %407 = vst [vmem:[#allocation3] sm:$0xff] %v399
        %408 = vst [vmem:[#allocation3 + $0x8] sm:$0xff] %v400
        %409 = vst [vmem:[#allocation3 + $0x10] sm:$0xff] %v401
        %410 = vst [vmem:[#allocation3 + $0x18] sm:$0xff] %v402
        %p411 = scmp.eq.s32.totalorder %s27, 3
        // Predicated region
        $region41: #{tpu_custom_call.1} parent=31 // pred_check
          %p412 = pneg %p411
        $region42: #{tpu_custom_call.1} parent=31 // pred_check_branch
          %414 = sbr.rel (%p412) target = $region44
        $region43: #{tpu_custom_call.1} parent=31 // pred_region
          %v415 = vld [vmem:[#allocation2] sm:$0xff]
          %v416 = vld [vmem:[#allocation2 + $0x8] sm:$0xff]
          %v417 = vld [vmem:[#allocation2 + $0x10] sm:$0xff]
          %v418 = vld [vmem:[#allocation2 + $0x18] sm:$0xff]
          %419 = vmax.xlane.f32.xlu0 %v415
          %v420 = vpop.xlane.xlu0 %419
          %421 = vmax.xlane.f32.xlu0 %v416
          %v422 = vpop.xlane.xlu0 %421
          %423 = vmax.xlane.f32.xlu0 %v417
          %v424 = vpop.xlane.xlu0 %423
          %425 = vmax.xlane.f32.xlu0 %v418
          %v426 = vpop.xlane.xlu0 %425
          %v427 = vld [vmem:[#allocation3] sm:$0xff]
          %v428 = vld [vmem:[#allocation3 + $0x8] sm:$0xff]
          %v429 = vld [vmem:[#allocation3 + $0x10] sm:$0xff]
          %v430 = vld [vmem:[#allocation3 + $0x18] sm:$0xff]
          %v431 = vsub.f32 %v415, %v420
          %v432 = vsub.f32 %v416, %v422
          %v433 = vsub.f32 %v417, %v424
          %v434 = vsub.f32 %v418, %v426
          %v435 = vmul.f32 %v431, 1.442695
          %v436 = vpow.pop %v435
          %v437 = vmul.f32 %v432, 1.442695
          %v438 = vpow.pop %v437
          %v439 = vmul.f32 %v433, 1.442695
          %v440 = vpow.pop %v439
          %v441 = vmul.f32 %v434, 1.442695
          %v442 = vpow.pop %v441
          %v443 = vmul.f32 %v427, %v436
          %v444 = vmul.f32 %v428, %v438
          %v445 = vmul.f32 %v429, %v440
          %v446 = vmul.f32 %v430, %v442
          %447 = vadd.xlane.f32.xlu0 %v443
          %v448 = vpop.xlane.xlu0 %447
          %449 = vadd.xlane.f32.xlu0 %v444
          %v450 = vpop.xlane.xlu0 %449
          %451 = vadd.xlane.f32.xlu0 %v445
          %v452 = vpop.xlane.xlu0 %451
          %453 = vadd.xlane.f32.xlu0 %v446
          %v454 = vpop.xlane.xlu0 %453
          %v455 = vlog2.pop %v448
          %v456 = vmul.f32 %v455, 0.6931472
          %v457 = vlog2.pop %v450
          %v458 = vmul.f32 %v457, 0.6931472
          %v459 = vlog2.pop %v452
          %v460 = vmul.f32 %v459, 0.6931472
          %v461 = vlog2.pop %v454
          %v462 = vmul.f32 %v461, 0.6931472
          %v463 = vadd.f32 %v420, %v456
          %v464 = vadd.f32 %v422, %v458
          %v465 = vadd.f32 %v424, %v460
          %v466 = vadd.f32 %v426, %v462
          %vm467 = vcmask 7168
          %468 = vst.msk [vmem:[%s280] sm:$0xff] %vm467, %v463
          %469 = vst.msk [vmem:[%s280 + $0x8] sm:$0xff] %vm467, %v464
          %470 = vst.msk [vmem:[%s280 + $0x10] sm:$0xff] %vm467, %v465
          %471 = vst.msk [vmem:[%s280 + $0x18] sm:$0xff] %vm467, %v466
        $region44: #{tpu_custom_call.1} parent=31 // pred_fallthru
          _
        %s472 = sand.u32 %s122, 1
        %s473 = scalar_lea.sflag [#allocation6], %s472
        %s474 = sand.u32 %s122, 1
        %s475 = smul.addr %s474, 32
        %s476 = scalar_lea.vmem [#allocation7], %s475
        %s477 = smul.u32 4, %s26
        %p478 = scmp.lt.s32.totalorder %s477, 7
        %s479 = scalar_select %p478, %s477, 7
        %s480 = smul.addr %s479, 8
        %s481 = scalar_lea.vmem %s4, %s480
        // Predicated region
        $region45: #{tpu_custom_call.1} parent=31 // pred_check
          %p482 = pneg %p132
        $region46: #{tpu_custom_call.1} parent=31 // pred_check_branch
          %484 = sbr.rel (%p482) target = $region48
        $region47: #{tpu_custom_call.1} parent=31 // pred_region
          %s485 = smul.u32 4, %s26
          %487 = vsyncadd %s473, 0
          %s488 = smul.addr %s485, 4
          %s489 = sadd.s32 %s27, %s488
          %s490 = smul.addr %s489, 8
          %s491 = scalar_lea.hbm %s3, %s490
          %s492 = sshll.u32 %s476, 4
          %s493 = int_to_ptr.vmem [resolvable:$true] %s492
          %s494 = sshll.u32 %s491, 4
          %s495 = int_to_ptr.hbm [resolvable:$true] %s494
          %500 = dma.vmem_to_hbm [thread:$0]  %s493, 512, %s495, %s473, 128, 512, 8
        $region48: #{tpu_custom_call.1} parent=31 // pred_fallthru
          _
        // Predicated region
        $region49: #{tpu_custom_call.1} parent=31 // pred_check
          %p501 = pneg %p158
        $region50: #{tpu_custom_call.1} parent=31 // pred_check_branch
          %503 = sbr.rel (%p501) target = $region52
        $region51: #{tpu_custom_call.1} parent=31 // pred_region
          %s504 = smul.u32 4, %s26
        $region52: #{tpu_custom_call.1} parent=31 // pred_fallthru
          _
      $region32: #{tpu_custom_call.1} parent=5 // pred_fallthru
        _
      %p505 = scmp.le.s32.totalorder 2, %s17
      // Predicated region
      $region53: #{tpu_custom_call.1} parent=5 // pred_check
        %p506 = pneg %p505
      $region54: #{tpu_custom_call.1} parent=5 // pred_check_branch
        %508 = sbr.rel (%p506) target = $region56
      $region55: #{tpu_custom_call.1} parent=5 // pred_region
        %s509 = ssub.s32 %s17, 2
        // Predicated region
        $region57: #{tpu_custom_call.1} parent=55 // pred_check
          %p510 = pneg %p138
        $region58: #{tpu_custom_call.1} parent=55 // pred_check_branch
          %512 = sbr.rel (%p510) target = $region60
        $region59: #{tpu_custom_call.1} parent=55 // pred_region
          %s513 = sand.u32 %s123, 1
          %s514 = scalar_lea.sflag [#allocation6], %s513
          %s515 = sand.u32 %s123, 1
          %s516 = smul.addr %s515, 32
          %s517 = scalar_lea.vmem [#allocation7], %s516
          %519 = dma.done %s514, 512
        $region60: #{tpu_custom_call.1} parent=55 // pred_fallthru
          _
        // Predicated region
        $region61: #{tpu_custom_call.1} parent=55 // pred_check
          %p520 = pneg %p164
        $region62: #{tpu_custom_call.1} parent=55 // pred_check_branch
          %522 = sbr.rel (%p520) target = $region64
        $region63: #{tpu_custom_call.1} parent=55 // pred_region
          %s523 = smul.u32 4, %s28
          %p524 = scmp.lt.s32.totalorder %s523, 7
          %s525 = scalar_select %p524, %s523, 7
          %s526 = smul.addr %s525, 8
          %s527 = scalar_lea.vmem %s4, %s526
        $region64: #{tpu_custom_call.1} parent=55 // pred_fallthru
          _
      $region56: #{tpu_custom_call.1} parent=5 // pred_fallthru
        _
    $region6: #{tpu_custom_call.1} parent=1 // loop_footer
      %s21 = sadd.s32 1, %s17
    $region7: #{tpu_custom_call.1} parent=1 // loop_footer_branch
      %16 = sbr.rel target = $region3
    $region8: #{tpu_custom_call.1} parent=1 // loop_exit
      _
    %528 = vsyncpa [#allocation5], 1
    %s529 = scalar_lea.sflag [#allocation5], 1
    %530 = vsyncpa %s529, 1
    %531 = vsyncpa [#allocation6], 1
    %s532 = scalar_lea.sflag [#allocation6], 1
    %533 = vsyncpa %s532, 1

</llo_original>
